<compile_context>
chip_gen: v6e
topology: v6e:2x2x1
jax: 0.10.0
libtpu: 0.0.40
codegen_flags: <defaults>
</compile_context>

<pallas_src>
import functools
import math

import numpy as np
import jax
import jax.numpy as jnp
from jax import lax
from jax.experimental import pallas as pl
from jax.experimental.pallas import tpu as pltpu


_LANE = 1024  # lane-dense last dim (multiple of 128): unmasked stores, long DMA rows


def _round_up(x, m):
    return ((x + m - 1) // m) * m


def _select_chip_tiling():
    """(max_block_rows, vmem_limit_bytes) tuned per TPU generation."""
    try:
        kind = jax.devices()[0].device_kind.lower()
    except Exception:  # pragma: no cover - CPU/interpret fallback
        kind = ""
    mib = 1024 * 1024
    if "v5 lite" in kind or "v5e" in kind or "v5litepod" in kind:
        # v5e: 8 MiB of double-buffered in+out at 512 rows; keep a raised but
        # conservative scoped-VMEM limit (128 MiB physical).
        return 512, 24 * mib
    if "v6" in kind or "trillium" in kind:
        # v6e: 128 MiB physical VMEM; 1024-row tiles (4 MiB) -> 16 MiB buffers.
        return 1024, 48 * mib
    if "v7" in kind:
        # v7x: only 64 MiB physical VMEM; 2048-row tiles (8 MiB) -> 32 MiB
        # buffers, stay under ~40 MiB scoped.
        return 2048, 40 * mib
    # Unknown / older chips: safe middle ground.
    return 1024, 40 * mib


def _pact_integer_act_kernel(x_ref, o_ref, *, eps_ratio, d_shift, alpha_out):
    # x holds integer values stored in a float32 container (as in the torch
    # module).  rint() is free at this roofline and makes the int cast robust
    # to tiny upstream float error (identical to truncation for exact ints,
    # which is the documented input contract).
    x_i = jnp.rint(x_ref[...]).astype(jnp.int32)
    # torch uses an int64 product; int32 is guaranteed safe by the
    # construction-time overflow check in PactIntegerAct.set_output_eps.
    prod = x_i * jnp.int32(eps_ratio)
    # D is a power of two -> floor division == arithmetic right shift
    # (matches torch's floor_divide semantics, including negative inputs).
    y = lax.shift_right_arithmetic(prod, jnp.int32(d_shift))
    # Clamp in the integer domain, single cast to f32 at the end.
    y = jnp.clip(y, jnp.int32(0), jnp.int32(alpha_out))
    o_ref[...] = y.astype(jnp.float32)


class PactIntegerAct:
    """JAX/Pallas equivalent of nemo PACT_IntegerAct (deployment mode)."""

    def __init__(self, eps_in, eps_out, alpha=1.0, bits=16,
                 requantization_factor=32):
        self.bits = bits
        self.eps_in = float(eps_in)
        self.eps_out = float(eps_out)
        self.alpha = float(alpha)  # torch.nn.Parameter(alpha); unused in forward
        self.requantization_factor = requantization_factor
        self._max_block_rows, self._vmem_limit_bytes = _select_chip_tiling()
        self.set_output_eps()

    def set_output_eps(self, limit_at_32_bits=True):
        self.alpha_out = 2.0 ** self.bits - 1
        d = 2 ** int(math.ceil(
            math.log2(self.requantization_factor * self.eps_out / self.eps_in)))
        if limit_at_32_bits:
            d = min(d, 2 ** (32 - self.bits))
        self.D = d
        self.d_shift = int(round(math.log2(d)))
        self.eps_ratio = int(round(d * self.eps_in / self.eps_out))
        if not (0 <= self.d_shift <= 31):
            # TODO(synk): add a two-step shift / int64-emulation path for
            # limit_at_32_bits=False configurations with D > 2^31.
            raise NotImplementedError(
                "d_shift outside [0, 31]; int32 shift path not applicable")
        # int32-product safety: inputs arrive in a float32 container, so they
        # are integer-exact only up to 2^24; require |x| * eps_ratio < 2^31.
        if (1 << 24) * max(self.eps_ratio, 1) >= (1 << 31):
            # TODO(synk): add a split-shift / int64-emulation path for very
            # large eps_ratio (torch uses an int64 product here).
            raise NotImplementedError(
                "eps_ratio too large for the int32 product path")

    def __call__(self, x, donate_input=False):
        # x: float32 tensor (NCHW in the torch module) holding integer values
        # with |x| <= 2^24 (documented assumption of the f32 integer container).
        orig_shape = x.shape
        total = x.size

        rows = pl.cdiv(total, _LANE)
        pad = rows * _LANE - total

        x_flat = x.reshape(-1)
        if x_flat.dtype != jnp.float32:
            x_flat = x_flat.astype(jnp.float32)
        if pad:
            # Minimal tail pad (< _LANE elements, zeros requantize+clamp to 0).
            # With allow_input_fusion the pad/reshape fuse into the kernel's
            # input DMA instead of materializing an intermediate HBM buffer.
            x_flat = jnp.pad(x_flat, (0, pad))
        x2d = x_flat.reshape(rows, _LANE)

        # Pick the block: biggest tile within the per-chip VMEM budget, but
        # keep the "parallel" grid >= 2 steps when possible (v7x has 2 TCs).
        # The ragged last block (rows % block_rows != 0) is handled by Pallas.
        if rows <= 8:
            block_rows = rows  # block == full extent -> no (8, 128) constraint
        else:
            block_rows = min(self._max_block_rows,
                             _round_up(pl.cdiv(rows, 2), 8))
        grid = (pl.cdiv(rows, block_rows),)

        kernel = functools.partial(
            _pact_integer_act_kernel,
            eps_ratio=self.eps_ratio,
            d_shift=self.d_shift,
            alpha_out=int(self.alpha_out),
        )

        out2d = pl.pallas_call(
            kernel,
            out_shape=jax.ShapeDtypeStruct((rows, _LANE), jnp.float32),
            grid=grid,
            in_specs=[pl.BlockSpec((block_rows, _LANE), lambda i: (i, 0))],
            out_specs=pl.BlockSpec((block_rows, _LANE), lambda i: (i, 0)),
            compiler_params=pltpu.CompilerParams(
                dimension_semantics=("parallel",),
                allow_input_fusion=[True],
                vmem_limit_bytes=self._vmem_limit_bytes),
            cost_estimate=pl.CostEstimate(
                flops=4 * rows * _LANE,
                transcendentals=0,
                bytes_accessed=2 * 4 * rows * _LANE),
            # Footprint-only optimization: reuse the input's HBM pages for the
            # output.  Off by default because without a donated input XLA must
            # insert a defensive copy (an extra HBM pass) which would defeat
            # the purpose on this bandwidth-bound op.
            input_output_aliases=({0: 0} if donate_input else {}),
        )(x2d)

        if pad:
            out = out2d.reshape(-1)[:total].reshape(orig_shape)
        else:
            out = out2d.reshape(orig_shape)  # bitcast-only on the aligned fast path
        return out


def _reference(x_int_np, act):
    """torch-exact semantics: int64 product, floor div, clamp, f32 output."""
    x64 = np.asarray(x_int_np, dtype=np.int64)
    ref = np.floor_divide(x64 * np.int64(act.eps_ratio), np.int64(act.D))
    return np.clip(ref, 0, int(act.alpha_out)).astype(np.float32)


if __name__ == "__main__":
    key = jax.random.PRNGKey(0)

    eps_in, eps_out = 0.003, 0.06
    act = PactIntegerAct(eps_in=eps_in, eps_out=eps_out, alpha=1.0, bits=16,
                         requantization_factor=32)

    # 1) Small NCHW conv activation, lane-aligned fast path (2048 elements).
    N, C, H, W = 2, 4, 16, 16
    k1, k2 = jax.random.split(key)
    x_int = jax.random.randint(k1, (N, C, H, W), minval=-200, maxval=4000,
                               dtype=jnp.int32)
    x = x_int.astype(jnp.float32)
    y = jax.block_until_ready(act(x))
    ref = _reference(np.asarray(x_int), act)
    assert y.shape == (N, C, H, W) and y.dtype == jnp.float32
    assert np.array_equal(np.asarray(y), ref), "mismatch vs reference (aligned)"

    # 2) Ragged shape: exercises the tail pad + partial (masked) last block.
    N2, C2, H2, W2 = 2, 3, 44, 44  # 11616 elements -> 12 rows, 8-row blocks
    x_int2 = jax.random.randint(k2, (N2, C2, H2, W2), minval=-500, maxval=3000,
                                dtype=jnp.int32)
    x2 = x_int2.astype(jnp.float32)
    y2 = jax.block_until_ready(act(x2))
    ref2 = _reference(np.asarray(x_int2), act)
    assert y2.shape == (N2, C2, H2, W2) and y2.dtype == jnp.float32
    assert np.array_equal(np.asarray(y2), ref2), "mismatch vs reference (ragged)"

    print("KERNEL_OK")
</pallas_src>

<mosaic_0001>
module attributes {stable_mosaic.version = 11 : i64} {
  func.func @_pact_integer_act_kernel(%arg0: i32, %arg1: memref<2x1024xf32, #tpu.memory_space<vmem>>, %arg2: memref<2x1024xf32, #tpu.memory_space<vmem>>) attributes {dimension_semantics = [#tpu.dimension_semantics<parallel>], iteration_bounds = array<i64: 1>, scalar_prefetch = 0 : i64, scratch_operands = 0 : i64, tpu.core_type = #tpu.core_type<tc>, window_params = [{transform_indices = @transform_0, window_bounds = array<i64: 2, 1024>}, {transform_indices = @transform_1, window_bounds = array<i64: 2, 1024>}]} {
    %c0 = arith.constant 0 : index
    %c0_0 = arith.constant 0 : index
    %0 = vector.load %arg1[%c0, %c0_0] : memref<2x1024xf32, #tpu.memory_space<vmem>>, vector<2x1024xf32>
    %1 = math.roundeven %0 : vector<2x1024xf32>
    %2 = arith.fptosi %1 : vector<2x1024xf32> to vector<2x1024xi32>
    %c51_i32 = arith.constant 51 : i32
    %3 = vector.broadcast %c51_i32 : i32 to vector<2x1024xi32>
    %4 = arith.muli %2, %3 : vector<2x1024xi32>
    %c10_i32 = arith.constant 10 : i32
    %5 = vector.broadcast %c10_i32 : i32 to vector<2x1024xi32>
    %6 = arith.shrsi %4, %5 : vector<2x1024xi32>
    %c0_i32 = arith.constant 0 : i32
    %c65535_i32 = arith.constant 65535 : i32
    %7 = vector.broadcast %c0_i32 : i32 to vector<2x1024xi32>
    %8 = arith.maxsi %7, %6 : vector<2x1024xi32>
    %9 = vector.broadcast %c65535_i32 : i32 to vector<2x1024xi32>
    %10 = arith.minsi %9, %8 : vector<2x1024xi32>
    %11 = arith.sitofp %10 : vector<2x1024xi32> to vector<2x1024xf32>
    %c0_1 = arith.constant 0 : index
    %c0_2 = arith.constant 0 : index
    %12 = vector.load %arg2[%c0_1, %c0_2] : memref<2x1024xf32, #tpu.memory_space<vmem>>, vector<2x1024xf32>
    tpu.vector_store %arg2[%c0_1, %c0_2], %11 {strides = array<i32>} : memref<2x1024xf32, #tpu.memory_space<vmem>>, vector<2x1024xf32>,
    return
  }
  func.func @transform_0(%arg0: i32) -> (i32, i32) {
    %c0_i32 = arith.constant 0 : i32
    %c0_i32_0 = arith.constant 0 : i32
    return %arg0, %c0_i32 : i32, i32
  }
  func.func @transform_1(%arg0: i32) -> (i32, i32) {
    %c0_i32 = arith.constant 0 : i32
    %c0_i32_0 = arith.constant 0 : i32
    return %arg0, %c0_i32 : i32, i32
  }
}

</mosaic_0001>

<llo_original>
// kernel: tpu_custom_call.1
$region0: #{tpu_custom_call.1}
  #allocation0 [shape = 'u32[]', space=smem, size = 0x4, offset = 0x4, fixed_abs, tag = 'smem constant byte address 0x4 - core index']
  #allocation1 [shape = 'u32[144,128]{1,0:T(1,128)}', space=vmem, size = 0x12000, scoped, tag = 'internal scratch']
  %s0 = inlined_call_operand.hbm [shape: f32[2,1024], index: 0, kind: input, shape index: {}]
  %s1 = inlined_call_operand.hbm [shape: f32[2,1024], index: 1, kind: output, shape index: {}]
  %s2 = sld [smem:[#allocation0]]
  $region18: #{tpu_custom_call.1} parent=0
    _
  %s4 = ssub.s32 1, %s2
  %s5 = scalar_select 0, %s4, %s2
  $region1: #{tpu_custom_call.1} parent=0
    #allocation2 [shape = 'u8[8192]{0}', space=vmem, size = 0x2000, scoped, tag = 'input window, operand 0, single buffered']
    #allocation3 [shape = 's32[1]{0}', space=sflag, size = 0x4, scoped, tag = 'scoped memory for tpu_custom_call.1']
    #allocation4 [shape = 's32[1]{0}', space=sflag, size = 0x4, scoped, tag = 'scoped memory for tpu_custom_call.1']
    #allocation5 [shape = 'u8[8192]{0}', space=vmem, size = 0x2000, scoped, tag = 'output window, operand 0, single buffered']
    %6 = vsyncpa [#allocation3], 0
    %7 = vsyncpa [#allocation4], 0
    // Predicated region
    $region2: #{tpu_custom_call.1} parent=1 // pred_check
      _
    $region3: #{tpu_custom_call.1} parent=1 // pred_check_branch
      %9 = sbr.rel (0) target = $region5
    $region4: #{tpu_custom_call.1} parent=1 // pred_region
      %s11 = ssub.s32 256, 256
      %12 = vsyncadd [#allocation3], %s11
      %s14 = sshll.u32 [#allocation2], 4
      %s15 = int_to_ptr.vmem [resolvable:$true] %s14
      %17 = dma.hbm_to_vmem [thread:$0]  %s0, 256, %s15, [#allocation3]
    $region5: #{tpu_custom_call.1} parent=1 // pred_fallthru
      _
    // Predicated region
    $region6: #{tpu_custom_call.1} parent=1 // pred_check
      _
    $region7: #{tpu_custom_call.1} parent=1 // pred_check_branch
      %19 = sbr.rel (0) target = $region9
    $region8: #{tpu_custom_call.1} parent=1 // pred_region
      %20 = dma.done [#allocation3], 256
    $region9: #{tpu_custom_call.1} parent=1 // pred_fallthru
      _
    %v21 = vld [vmem:[#allocation2] sm:$0xff]
    %v22 = vld [vmem:[#allocation2 + $0x8] sm:$0xff]
    %v23 = vcvt.f32.s32.ties.to.even %v21
    %v24 = vcvt.f32.s32.ties.to.even %v22
    %v25 = vmul.u32 %v23, 51
    %v26 = vmul.u32 %v24, 51
    %v27 = vshra.s32 %v25, 10
    %v28 = vshra.s32 %v26, 10
    %vm29 = vcmp.gt.s32.totalorder %v27, 0
    %v30 = vsel %vm29, %v27, 0
    %vm31 = vcmp.gt.s32.totalorder %v28, 0
    %v32 = vsel %vm31, %v28, 0
    %vm33 = vcmp.lt.s32.totalorder %v30, 65535
    %v34 = vsel %vm33, %v30, 65535
    %vm35 = vcmp.lt.s32.totalorder %v32, 65535
    %v36 = vsel %vm35, %v32, 65535
    %v37 = vcvt.s32.f32 %v34
    %v38 = vcvt.s32.f32 %v36
    %39 = vst [vmem:[#allocation5] sm:$0xff] %v37
    %40 = vst [vmem:[#allocation5 + $0x8] sm:$0xff] %v38
    // Predicated region
    $region10: #{tpu_custom_call.1} parent=1 // pred_check
      _
    $region11: #{tpu_custom_call.1} parent=1 // pred_check_branch
      %42 = sbr.rel (0) target = $region13
    $region12: #{tpu_custom_call.1} parent=1 // pred_region
      %s44 = ssub.s32 256, 256
      %45 = vsyncadd [#allocation4], %s44
      %s47 = sshll.u32 [#allocation5], 4
      %s48 = int_to_ptr.vmem [resolvable:$true] %s47
      %50 = dma.vmem_to_hbm [thread:$0]  %s48, 256, %s1, [#allocation4]
    $region13: #{tpu_custom_call.1} parent=1 // pred_fallthru
      _
    // Predicated region
    $region14: #{tpu_custom_call.1} parent=1 // pred_check
      _
    $region15: #{tpu_custom_call.1} parent=1 // pred_check_branch
      %52 = sbr.rel (0) target = $region17
    $region16: #{tpu_custom_call.1} parent=1 // pred_region
      %53 = dma.done [#allocation4], 256
    $region17: #{tpu_custom_call.1} parent=1 // pred_fallthru
      _
    %54 = vsyncpa [#allocation3], 1
    %55 = vsyncpa [#allocation4], 1

</llo_original>
